<compile_context>
chip_gen: v6e
topology: v6e:2x2x1
jax: 0.10.0
libtpu: 0.0.40
codegen_flags: <defaults>
</compile_context>

<pallas_src>
import functools

import jax
import jax.numpy as jnp
from jax import lax
from jax.experimental import pallas as pl
from jax.experimental.pallas import tpu as pltpu


def _dwconv_kernel(m_ref, x_ref, w_ref, b_ref, o_ref, *, H, W):
    """One (batch, channel-block) tile.

    m_ref : (4, H*W) f32 {0,1} border masks:
            [col>=1, col<=W-2, row>=1, row<=H-2]
    x_ref : (1, C_TILE, H*W) input tile (channels on sublanes, H*W on lanes)
    w_ref : (C_TILE, 9)      depthwise 3x3 weights, tap index k = kh*3 + kw
    b_ref : (C_TILE, 1)      bias
    o_ref : (1, C_TILE, H*W) output tile
    """
    hw = H * W

    # Hoisted loads / casts: done exactly once per tile.
    x = x_ref[0].astype(jnp.float32)             # (C_TILE, HW)
    w = w_ref[...].astype(jnp.float32)           # (C_TILE, 9)
    b = b_ref[...].astype(jnp.float32)           # (C_TILE, 1)
    m = m_ref[...]                               # (4, HW) f32

    m_l = m[0:1, :]      # col >= 1     -> left neighbour inside image
    m_r = m[1:2, :]      # col <= W-2   -> right neighbour inside image
    m_t = m[2:3, :]      # row >= 1     -> upper row inside image
    m_b = m[3:4, :]      # row <= H-2   -> lower row inside image

    # Horizontal neighbours (lane rolls on the XLU); wrapped values at the
    # row boundary are zeroed by the column masks (pad=1 semantics).
    x_l = pltpu.roll(x, shift=1 % hw, axis=1) * m_l            # x[p-1]
    x_r = pltpu.roll(x, shift=(hw - 1) % hw, axis=1) * m_r     # x[p+1]

    # Separable 3x3: one 3-tap weighted sum per kernel row ...
    s_top = w[:, 0:1] * x_l + w[:, 1:2] * x + w[:, 2:3] * x_r  # kh = 0
    s_mid = w[:, 3:4] * x_l + w[:, 4:5] * x + w[:, 5:6] * x_r  # kh = 1
    s_bot = w[:, 6:7] * x_l + w[:, 7:8] * x + w[:, 8:9] * x_r  # kh = 2

    # ... then place the top/bottom row sums with a single +/-W roll each,
    # masked at the image top/bottom so zero padding is respected.
    acc = s_mid + b
    acc = acc + pltpu.roll(s_top, shift=W % hw, axis=1) * m_t         # s_top[p-W]
    acc = acc + pltpu.roll(s_bot, shift=(hw - W) % hw, axis=1) * m_b  # s_bot[p+W]

    o_ref[0] = acc.astype(o_ref.dtype)


def _pick_c_tile(C, hw, itemsize, n_batch,
                 budget_bytes=4 * 1024 * 1024, min_grid_steps=4):
    """Channel tile that (a) divides C, (b) keeps the sublane dim a
    dtype-appropriate multiple (8 f32 / 16 bf16 / 32 int8) unless it equals C,
    (c) keeps one block under the VMEM budget, and (d) if possible leaves at
    least `min_grid_steps` grid steps so both v7x TensorCores get work."""
    sub = max(1, 32 // itemsize)
    divisors = [d for d in range(C, 0, -1) if C % d == 0]          # descending
    cands = [d for d in divisors if d % sub == 0 or d == C]
    if not cands:
        cands = [C]
    want_blocks = -(-min_grid_steps // max(1, n_batch))            # ceil
    for need_blocks in (want_blocks, 1):
        for d in cands:
            if d * hw * itemsize <= budget_bytes and (C // d) >= need_blocks:
                return d
    return cands[-1]


def dwconv_pallas(x_nchw, weight, bias, *, c_tile=None):
    """Depthwise conv matching nn.Conv2d(dim, dim, 3, 1, 1, groups=dim).

    x_nchw : (N, C, H, W)
    weight : (C, 1, 3, 3)   (PyTorch depthwise layout)
    bias   : (C,)
    returns: (N, C, H, W)
    """
    N, C, H, W = x_nchw.shape
    hw = H * W
    itemsize = jnp.dtype(x_nchw.dtype).itemsize
    if c_tile is None:
        c_tile = _pick_c_tile(C, hw, itemsize, n_batch=N)
    assert C % c_tile == 0, "channel tile must divide C"

    # Layout plumbing only (no transpose, no spatial pad): flatten spatial dims
    # so the last (lane) axis is H*W and channels are on sublanes.
    x_flat = x_nchw.reshape(N, C, hw)
    w_flat = weight.reshape(C, 9)
    b_col = bias.reshape(C, 1)

    # Grid-constant {0,1} border masks (applied as multiplies in-kernel).
    col = jnp.tile(jnp.arange(W, dtype=jnp.int32), H)
    row = jnp.repeat(jnp.arange(H, dtype=jnp.int32), W)
    masks = jnp.stack(
        [col >= 1, col <= W - 2, row >= 1, row <= H - 2], axis=0
    ).astype(jnp.float32)                                          # (4, H*W)

    grid = (N, C // c_tile)
    kernel = functools.partial(_dwconv_kernel, H=H, W=W)

    flops = 2 * 9 * N * C * hw + N * C * hw                        # MACs + bias
    bytes_accessed = (2 * N * C * hw) * itemsize \
        + weight.size * jnp.dtype(weight.dtype).itemsize \
        + bias.size * jnp.dtype(bias.dtype).itemsize
    cost = pl.CostEstimate(flops=int(flops), transcendentals=0,
                           bytes_accessed=int(bytes_accessed))

    block_bytes = c_tile * hw * itemsize
    # Generation-aware VMEM limit: never claim the entire physical VMEM
    # (v7x TC has only 64 MiB); leave headroom for spills / compiler scratch.
    try:
        vmem_cap = int(getattr(pltpu.get_tpu_info(), "vmem_capacity_bytes",
                               128 * 1024 * 1024))
    except Exception:
        vmem_cap = 64 * 1024 * 1024
    cap = min(48 * 1024 * 1024, (3 * vmem_cap) // 4)
    vmem_limit = int(min(cap, max(32 * 1024 * 1024, 12 * block_bytes)))

    out_flat = pl.pallas_call(
        kernel,
        out_shape=jax.ShapeDtypeStruct((N, C, hw), x_nchw.dtype),
        grid_spec=pltpu.PrefetchScalarGridSpec(
            num_scalar_prefetch=0,
            grid=grid,
            in_specs=[
                pl.BlockSpec((4, hw), lambda n, c: (0, 0)),              # masks
                pl.BlockSpec((1, c_tile, hw), lambda n, c: (n, c, 0)),   # x
                pl.BlockSpec((c_tile, 9), lambda n, c: (c, 0)),          # w
                pl.BlockSpec((c_tile, 1), lambda n, c: (c, 0)),          # b
            ],
            out_specs=pl.BlockSpec((1, c_tile, hw), lambda n, c: (n, c, 0)),
        ),
        compiler_params=pltpu.CompilerParams(
            dimension_semantics=("parallel", "parallel"),
            vmem_limit_bytes=vmem_limit,
        ),
        cost_estimate=cost,
    )(masks, x_flat, w_flat, b_col)

    return out_flat.reshape(N, C, H, W)


def dwconv_reference(x_nchw, weight, bias):
    """Pure-JAX reference (grouped conv) for correctness checking."""
    C = x_nchw.shape[1]
    out = lax.conv_general_dilated(
        x_nchw, weight,
        window_strides=(1, 1),
        padding=((1, 1), (1, 1)),
        dimension_numbers=("NCHW", "OIHW", "NCHW"),
        feature_group_count=C,
    )
    return out + bias.reshape(1, C, 1, 1)


if __name__ == "__main__":
    key = jax.random.PRNGKey(0)
    k_x, k_w, k_b, k_x2, k_w2, k_b2 = jax.random.split(key, 6)

    # Config 1: small DWConv block, single channel tile (C_TILE == C).
    N, C, H, W = 2, 8, 16, 16
    x = jax.random.normal(k_x, (N, C, H, W), dtype=jnp.float32)
    weight = jax.random.normal(k_w, (C, 1, 3, 3), dtype=jnp.float32) * 0.1
    bias = jax.random.normal(k_b, (C,), dtype=jnp.float32) * 0.1

    out = jax.block_until_ready(dwconv_pallas(x, weight, bias))
    ref = dwconv_reference(x, weight, bias)
    assert out.shape == ref.shape == (N, C, H, W)
    assert jnp.allclose(out, ref, atol=1e-4, rtol=1e-4), "config1 mismatch"

    # Config 2: exercises channel tiling (grid over C blocks) and a
    # non-power-of-two spatial size.
    N2, C2, H2, W2 = 1, 32, 12, 20
    x2 = jax.random.normal(k_x2, (N2, C2, H2, W2), dtype=jnp.float32)
    w2 = jax.random.normal(k_w2, (C2, 1, 3, 3), dtype=jnp.float32) * 0.1
    b2 = jax.random.normal(k_b2, (C2,), dtype=jnp.float32) * 0.1

    out2 = jax.block_until_ready(dwconv_pallas(x2, w2, b2, c_tile=8))
    ref2 = dwconv_reference(x2, w2, b2)
    assert out2.shape == ref2.shape == (N2, C2, H2, W2)
    assert jnp.allclose(out2, ref2, atol=1e-4, rtol=1e-4), "config2 mismatch"

    print("KERNEL_OK")
</pallas_src>

<mosaic_0001>
module attributes {stable_mosaic.version = 11 : i64} {
  func.func @_dwconv_kernel(%arg0: i32, %arg1: i32, %arg2: memref<4x256xf32, #tpu.memory_space<vmem>>, %arg3: memref<1x8x256xf32, #tpu.memory_space<vmem>>, %arg4: memref<8x9xf32, #tpu.memory_space<vmem>>, %arg5: memref<8x1xf32, #tpu.memory_space<vmem>>, %arg6: memref<1x8x256xf32, #tpu.memory_space<vmem>>) attributes {dimension_semantics = [#tpu.dimension_semantics<parallel>, #tpu.dimension_semantics<parallel>], iteration_bounds = array<i64: 2, 1>, scalar_prefetch = 0 : i64, scratch_operands = 0 : i64, tpu.core_type = #tpu.core_type<tc>, window_params = [{pipeline_mode = #tpu.pipeline_mode<synchronous>, transform_indices = @transform_0, window_bounds = array<i64: 4, 256>}, {transform_indices = @transform_1, window_bounds = array<i64: 1, 8, 256>}, {transform_indices = @transform_2, window_bounds = array<i64: 8, 9>}, {transform_indices = @transform_3, window_bounds = array<i64: 8, 1>}, {transform_indices = @transform_4, window_bounds = array<i64: 1, 8, 256>}]} {
    %c0 = arith.constant 0 : index
    %c0_0 = arith.constant 0 : index
    %c0_1 = arith.constant 0 : index
    %0 = vector.load %arg3[%c0, %c0_0, %c0_1] : memref<1x8x256xf32, #tpu.memory_space<vmem>>, vector<1x8x256xf32>
    %1 = vector.shape_cast %0 : vector<1x8x256xf32> to vector<8x256xf32>
    %c0_2 = arith.constant 0 : index
    %c0_3 = arith.constant 0 : index
    %2 = vector.load %arg4[%c0_2, %c0_3] : memref<8x9xf32, #tpu.memory_space<vmem>>, vector<8x9xf32>
    %c0_4 = arith.constant 0 : index
    %c0_5 = arith.constant 0 : index
    %3 = vector.load %arg5[%c0_4, %c0_5] : memref<8x1xf32, #tpu.memory_space<vmem>>, vector<8x1xf32>
    %c0_6 = arith.constant 0 : index
    %c0_7 = arith.constant 0 : index
    %4 = vector.load %arg2[%c0_6, %c0_7] : memref<4x256xf32, #tpu.memory_space<vmem>>, vector<4x256xf32>
    %5 = vector.extract_strided_slice %4 {offsets = [0, 0], sizes = [1, 256], strides = [1, 1]} : vector<4x256xf32> to vector<1x256xf32>
    %6 = vector.extract_strided_slice %4 {offsets = [1, 0], sizes = [1, 256], strides = [1, 1]} : vector<4x256xf32> to vector<1x256xf32>
    %7 = vector.extract_strided_slice %4 {offsets = [2, 0], sizes = [1, 256], strides = [1, 1]} : vector<4x256xf32> to vector<1x256xf32>
    %8 = vector.extract_strided_slice %4 {offsets = [3, 0], sizes = [1, 256], strides = [1, 1]} : vector<4x256xf32> to vector<1x256xf32>
    %c1_i32 = arith.constant 1 : i32
    %9 = tpu.dynamic_rotate %1 by %c1_i32 dim 1 : vector<8x256xf32>, i32 -> vector<8x256xf32>
    %10 = vector.broadcast %5 : vector<1x256xf32> to vector<8x256xf32>
    %11 = arith.mulf %9, %10 : vector<8x256xf32>
    %c255_i32 = arith.constant 255 : i32
    %12 = tpu.dynamic_rotate %1 by %c255_i32 dim 1 : vector<8x256xf32>, i32 -> vector<8x256xf32>
    %13 = vector.broadcast %6 : vector<1x256xf32> to vector<8x256xf32>
    %14 = arith.mulf %12, %13 : vector<8x256xf32>
    %15 = vector.extract_strided_slice %2 {offsets = [0, 0], sizes = [8, 1], strides = [1, 1]} : vector<8x9xf32> to vector<8x1xf32>
    %16 = vector.broadcast %15 : vector<8x1xf32> to vector<8x256xf32>
    %17 = arith.mulf %16, %11 : vector<8x256xf32>
    %18 = vector.extract_strided_slice %2 {offsets = [0, 1], sizes = [8, 1], strides = [1, 1]} : vector<8x9xf32> to vector<8x1xf32>
    %19 = vector.broadcast %18 : vector<8x1xf32> to vector<8x256xf32>
    %20 = arith.mulf %19, %1 : vector<8x256xf32>
    %21 = arith.addf %17, %20 : vector<8x256xf32>
    %22 = vector.extract_strided_slice %2 {offsets = [0, 2], sizes = [8, 1], strides = [1, 1]} : vector<8x9xf32> to vector<8x1xf32>
    %23 = vector.broadcast %22 : vector<8x1xf32> to vector<8x256xf32>
    %24 = arith.mulf %23, %14 : vector<8x256xf32>
    %25 = arith.addf %21, %24 : vector<8x256xf32>
    %26 = vector.extract_strided_slice %2 {offsets = [0, 3], sizes = [8, 1], strides = [1, 1]} : vector<8x9xf32> to vector<8x1xf32>
    %27 = vector.broadcast %26 : vector<8x1xf32> to vector<8x256xf32>
    %28 = arith.mulf %27, %11 : vector<8x256xf32>
    %29 = vector.extract_strided_slice %2 {offsets = [0, 4], sizes = [8, 1], strides = [1, 1]} : vector<8x9xf32> to vector<8x1xf32>
    %30 = vector.broadcast %29 : vector<8x1xf32> to vector<8x256xf32>
    %31 = arith.mulf %30, %1 : vector<8x256xf32>
    %32 = arith.addf %28, %31 : vector<8x256xf32>
    %33 = vector.extract_strided_slice %2 {offsets = [0, 5], sizes = [8, 1], strides = [1, 1]} : vector<8x9xf32> to vector<8x1xf32>
    %34 = vector.broadcast %33 : vector<8x1xf32> to vector<8x256xf32>
    %35 = arith.mulf %34, %14 : vector<8x256xf32>
    %36 = arith.addf %32, %35 : vector<8x256xf32>
    %37 = vector.extract_strided_slice %2 {offsets = [0, 6], sizes = [8, 1], strides = [1, 1]} : vector<8x9xf32> to vector<8x1xf32>
    %38 = vector.broadcast %37 : vector<8x1xf32> to vector<8x256xf32>
    %39 = arith.mulf %38, %11 : vector<8x256xf32>
    %40 = vector.extract_strided_slice %2 {offsets = [0, 7], sizes = [8, 1], strides = [1, 1]} : vector<8x9xf32> to vector<8x1xf32>
    %41 = vector.broadcast %40 : vector<8x1xf32> to vector<8x256xf32>
    %42 = arith.mulf %41, %1 : vector<8x256xf32>
    %43 = arith.addf %39, %42 : vector<8x256xf32>
    %44 = vector.extract_strided_slice %2 {offsets = [0, 8], sizes = [8, 1], strides = [1, 1]} : vector<8x9xf32> to vector<8x1xf32>
    %45 = vector.broadcast %44 : vector<8x1xf32> to vector<8x256xf32>
    %46 = arith.mulf %45, %14 : vector<8x256xf32>
    %47 = arith.addf %43, %46 : vector<8x256xf32>
    %48 = vector.broadcast %3 : vector<8x1xf32> to vector<8x256xf32>
    %49 = arith.addf %36, %48 : vector<8x256xf32>
    %c16_i32 = arith.constant 16 : i32
    %50 = tpu.dynamic_rotate %25 by %c16_i32 dim 1 : vector<8x256xf32>, i32 -> vector<8x256xf32>
    %51 = vector.broadcast %7 : vector<1x256xf32> to vector<8x256xf32>
    %52 = arith.mulf %50, %51 : vector<8x256xf32>
    %53 = arith.addf %49, %52 : vector<8x256xf32>
    %c240_i32 = arith.constant 240 : i32
    %54 = tpu.dynamic_rotate %47 by %c240_i32 dim 1 : vector<8x256xf32>, i32 -> vector<8x256xf32>
    %55 = vector.broadcast %8 : vector<1x256xf32> to vector<8x256xf32>
    %56 = arith.mulf %54, %55 : vector<8x256xf32>
    %57 = arith.addf %53, %56 : vector<8x256xf32>
    %c0_8 = arith.constant 0 : index
    %c0_9 = arith.constant 0 : index
    %c0_10 = arith.constant 0 : index
    %58 = vector.load %arg6[%c0_8, %c0_9, %c0_10] : memref<1x8x256xf32, #tpu.memory_space<vmem>>, vector<1x8x256xf32>
    %59 = vector.shape_cast %58 : vector<1x8x256xf32> to vector<8x256xf32>
    %60 = vector.shape_cast %57 : vector<8x256xf32> to vector<1x8x256xf32>
    tpu.vector_store %arg6[%c0_8, %c0_9, %c0_10], %60 {strides = array<i32>} : memref<1x8x256xf32, #tpu.memory_space<vmem>>, vector<1x8x256xf32>,
    return
  }
  func.func @transform_0(%arg0: i32, %arg1: i32) -> (i32, i32) {
    %c0_i32 = arith.constant 0 : i32
    %c0_i32_0 = arith.constant 0 : i32
    %c0_i32_1 = arith.constant 0 : i32
    return %c0_i32, %c0_i32_0 : i32, i32
  }
  func.func @transform_1(%arg0: i32, %arg1: i32) -> (i32, i32, i32) {
    %c0_i32 = arith.constant 0 : i32
    %c0_i32_0 = arith.constant 0 : i32
    return %arg0, %arg1, %c0_i32 : i32, i32, i32
  }
  func.func @transform_2(%arg0: i32, %arg1: i32) -> (i32, i32) {
    %c0_i32 = arith.constant 0 : i32
    %c0_i32_0 = arith.constant 0 : i32
    return %arg1, %c0_i32 : i32, i32
  }
  func.func @transform_3(%arg0: i32, %arg1: i32) -> (i32, i32) {
    %c0_i32 = arith.constant 0 : i32
    %c0_i32_0 = arith.constant 0 : i32
    return %arg1, %c0_i32 : i32, i32
  }
  func.func @transform_4(%arg0: i32, %arg1: i32) -> (i32, i32, i32) {
    %c0_i32 = arith.constant 0 : i32
    %c0_i32_0 = arith.constant 0 : i32
    return %arg0, %arg1, %c0_i32 : i32, i32, i32
  }
}

</mosaic_0001>

<llo_original>
// kernel: tpu_custom_call.1
$region0: #{tpu_custom_call.1}
  #allocation0 [shape = 'u32[]', space=smem, size = 0x4, offset = 0x4, fixed_abs, tag = 'smem constant byte address 0x4 - core index']
  #allocation1 [shape = 'u32[144,128]{1,0:T(1,128)}', space=vmem, size = 0x12000, scoped, tag = 'internal scratch']
  %s0 = inlined_call_operand.vmem [shape: f32[4,256], index: 0, kind: input, shape index: {}]
  %s1 = inlined_call_operand.hbm [shape: f32[2,8,256], index: 1, kind: input, shape index: {}]
  %s2 = inlined_call_operand.hbm [shape: f32[8,9], index: 2, kind: input, shape index: {}]
  %s3 = inlined_call_operand.vmem [shape: f32[8,1], index: 3, kind: input, shape index: {}]
  %s4 = inlined_call_operand.hbm [shape: f32[2,8,256], index: 4, kind: output, shape index: {}]
  %s5 = sld [smem:[#allocation0]]
  $region57: #{tpu_custom_call.1} parent=0
    _
  %s7 = ssub.s32 1, %s5
  %s8 = scalar_select 0, %s7, %s5
  $region1: #{tpu_custom_call.1} parent=0
    #allocation2 [shape = 'u8[16384]{0}', space=vmem, size = 0x4000, scoped, tag = 'input window, operand 1']
    #allocation3 [shape = 's32[2]{0}', space=sflag, size = 0x8, scoped, tag = 'scoped memory for tpu_custom_call.1']
    #allocation4 [shape = 's32[2]{0}', space=sflag, size = 0x8, scoped, tag = 'scoped memory for tpu_custom_call.1']
    #allocation5 [shape = 'u8[4096]{0}', space=vmem, size = 0x1000, scoped, tag = 'input window, operand 2, single buffered']
    #allocation6 [shape = 's32[1]{0}', space=sflag, size = 0x4, scoped, tag = 'scoped memory for tpu_custom_call.1']
    #allocation7 [shape = 'u8[16384]{0}', space=vmem, size = 0x4000, scoped, tag = 'output window, operand 0']
    %9 = vsyncpa [#allocation3], 0
    %s10 = scalar_lea.sflag [#allocation3], 1
    %11 = vsyncpa %s10, 0
    %12 = vsyncpa [#allocation6], 0
    %13 = vsyncpa [#allocation4], 0
    %s14 = scalar_lea.sflag [#allocation4], 1
    %15 = vsyncpa %s14, 0
    loop: start=0, step=1, limit=4
    $region2: #{tpu_custom_call.1} parent=1 // loop_pre_header
      _
    $region3: #{tpu_custom_call.1} parent=1 // loop_header
      %s17 = sphi 0, %s21
      %p18 = scmp.ge.s32.totalorder %s17, 4
      %s24 = sphi 0, %s36
      %s25 = sphi 0, %s32
      %s26 = sphi 0, %s24
      %s27 = sphi 0, %s25
      %s28 = sphi 0, %s26
      %s29 = sphi 0, %s27
      %s37 = sphi 0, %s37
      %s39 = sphi 0, %s37
      %s40 = sphi 0, %s39
      %s54 = sphi 0, %s40
      %s62 = sphi 0, %s64
      %s65 = sphi 0, %s62
      %s66 = sphi 0, %s65
      %s82 = sphi 0, %s66
      %s88 = sphi 0, %s90
      %s91 = sphi 0, %s88
      %s92 = sphi 0, %s91
      %s108 = sphi 0, %s92
      %s114 = sphi 0, %s116
      %s117 = sphi 0, %s114
      %s118 = sphi 0, %s117
      %s134 = sphi 0, %s118
      %s142 = sphi 0, %s144
      %s145 = sphi 0, %s142
      %s146 = sphi 0, %s145
      %s162 = sphi 0, %s146
    $region4: #{tpu_custom_call.1} parent=1 // loop_header_branch
      %20 = sbr.rel (%p18) target = $region8
    $region5: #{tpu_custom_call.1} parent=1 // loop_body
      %s22 = ssub.s32 %s17, 1
      %s23 = ssub.s32 %s17, 2
      %s30 = sadd.s32 1, %s25
      %p31 = scmp.ge.s32.totalorder %s30, 1
      %s32 = scalar_select %p31, 0, %s30
      %s33 = sadd.s32 1, %s24
      %s34 = scalar_select %p31, %s33, %s24
      %p35 = scmp.ge.s32.totalorder %s34, 2
      %s36 = scalar_select %p35, 0, %s34
      %s38 = sadd.s32 %s37, 1
      %p41 = scmp.eq.s32.totalorder %s17, 1
      %p42 = scmp.ne.s32.totalorder %s37, %s39
      %p43 = scmp.eq.s32.totalorder %s17, 0
      %p44 = por %p42, %p43
      %p45 = scmp.ne.s32.totalorder %s37, %s39
      %p46 = scmp.eq.s32.totalorder %s22, 1
      %p47 = por %p45, %p46
      %p48 = scmp.ne.s32.totalorder %s39, %s40
      %p49 = scmp.eq.s32.totalorder %s22, 0
      %p50 = por %p48, %p49
      %p51 = scmp.ne.s32.totalorder %s39, %s40
      %p52 = scmp.eq.s32.totalorder %s23, 1
      %p53 = por %p51, %p52
      %p55 = scmp.ne.s32.totalorder %s40, %s54
      %p56 = scmp.eq.s32.totalorder %s23, 0
      %p57 = por %p55, %p56
      %s58 = ssub.s32 %s24, %s36
      %s59 = ssub.s32 %s25, %s32
      %s60 = sor.u32 %s58, %s59
      %p61 = scmp.eq.s32.totalorder %s60, 0
      %s63 = sadd.s32 %s62, 1
      %s64 = scalar_select %p61, %s62, %s63
      %p67 = pneg %p61
      %p68 = scmp.eq.s32.totalorder %s17, 1
      %p69 = por %p67, %p68
      %p70 = scmp.ne.s32.totalorder %s62, %s65
      %p71 = scmp.eq.s32.totalorder %s17, 0
      %p72 = por %p70, %p71
      %p73 = scmp.ne.s32.totalorder %s62, %s65
      %p74 = scmp.eq.s32.totalorder %s22, 1
      %p75 = por %p73, %p74
      %p76 = scmp.ne.s32.totalorder %s65, %s66
      %p77 = scmp.eq.s32.totalorder %s22, 0
      %p78 = por %p76, %p77
      %p79 = scmp.ne.s32.totalorder %s65, %s66
      %p80 = scmp.eq.s32.totalorder %s23, 1
      %p81 = por %p79, %p80
      %p83 = scmp.ne.s32.totalorder %s66, %s82
      %p84 = scmp.eq.s32.totalorder %s23, 0
      %p85 = por %p83, %p84
      %s86 = ssub.s32 %s25, %s32
      %p87 = scmp.eq.s32.totalorder %s86, 0
      %s89 = sadd.s32 %s88, 1
      %s90 = scalar_select %p87, %s88, %s89
      %p93 = pneg %p87
      %p94 = scmp.eq.s32.totalorder %s17, 1
      %p95 = por %p93, %p94
      %p96 = scmp.ne.s32.totalorder %s88, %s91
      %p97 = scmp.eq.s32.totalorder %s17, 0
      %p98 = por %p96, %p97
      %p99 = scmp.ne.s32.totalorder %s88, %s91
      %p100 = scmp.eq.s32.totalorder %s22, 1
      %p101 = por %p99, %p100
      %p102 = scmp.ne.s32.totalorder %s91, %s92
      %p103 = scmp.eq.s32.totalorder %s22, 0
      %p104 = por %p102, %p103
      %p105 = scmp.ne.s32.totalorder %s91, %s92
      %p106 = scmp.eq.s32.totalorder %s23, 1
      %p107 = por %p105, %p106
      %p109 = scmp.ne.s32.totalorder %s92, %s108
      %p110 = scmp.eq.s32.totalorder %s23, 0
      %p111 = por %p109, %p110
      %s112 = ssub.s32 %s25, %s32
      %p113 = scmp.eq.s32.totalorder %s112, 0
      %s115 = sadd.s32 %s114, 1
      %s116 = scalar_select %p113, %s114, %s115
      %p119 = pneg %p113
      %p120 = scmp.eq.s32.totalorder %s17, 1
      %p121 = por %p119, %p120
      %p122 = scmp.ne.s32.totalorder %s114, %s117
      %p123 = scmp.eq.s32.totalorder %s17, 0
      %p124 = por %p122, %p123
      %p125 = scmp.ne.s32.totalorder %s114, %s117
      %p126 = scmp.eq.s32.totalorder %s22, 1
      %p127 = por %p125, %p126
      %p128 = scmp.ne.s32.totalorder %s117, %s118
      %p129 = scmp.eq.s32.totalorder %s22, 0
      %p130 = por %p128, %p129
      %p131 = scmp.ne.s32.totalorder %s117, %s118
      %p132 = scmp.eq.s32.totalorder %s23, 1
      %p133 = por %p131, %p132
      %p135 = scmp.ne.s32.totalorder %s118, %s134
      %p136 = scmp.eq.s32.totalorder %s23, 0
      %p137 = por %p135, %p136
      %s138 = ssub.s32 %s24, %s36
      %s139 = ssub.s32 %s25, %s32
      %s140 = sor.u32 %s138, %s139
      %p141 = scmp.eq.s32.totalorder %s140, 0
      %s143 = sadd.s32 %s142, 1
      %s144 = scalar_select %p141, %s142, %s143
      %p147 = pneg %p141
      %p148 = scmp.eq.s32.totalorder %s17, 1
      %p149 = por %p147, %p148
      %p150 = scmp.ne.s32.totalorder %s142, %s145
      %p151 = scmp.eq.s32.totalorder %s17, 0
      %p152 = por %p150, %p151
      %p153 = scmp.ne.s32.totalorder %s142, %s145
      %p154 = scmp.eq.s32.totalorder %s22, 1
      %p155 = por %p153, %p154
      %p156 = scmp.ne.s32.totalorder %s145, %s146
      %p157 = scmp.eq.s32.totalorder %s22, 0
      %p158 = por %p156, %p157
      %p159 = scmp.ne.s32.totalorder %s145, %s146
      %p160 = scmp.eq.s32.totalorder %s23, 1
      %p161 = por %p159, %p160
      %p163 = scmp.ne.s32.totalorder %s146, %s162
      %p164 = scmp.eq.s32.totalorder %s23, 0
      %p165 = por %p163, %p164
      %p166 = scmp.le.s32.totalorder 1, %s17
      %p167 = scmp.lt.s32.totalorder %s17, 3
      %p168 = pnand %p166, %p167
      %p169 = pneg %p168
      // Predicated region
      $region9: #{tpu_custom_call.1} parent=5 // pred_check
        _
      $region10: #{tpu_custom_call.1} parent=5 // pred_check_branch
        %171 = sbr.rel (%p168) target = $region12
      $region11: #{tpu_custom_call.1} parent=5 // pred_region
        %s172 = ssub.s32 %s17, 1
        // Predicated region
        $region13: #{tpu_custom_call.1} parent=11 // pred_check
          %p173 = pneg %p50
        $region14: #{tpu_custom_call.1} parent=11 // pred_check_branch
          %175 = sbr.rel (%p173) target = $region16
        $region15: #{tpu_custom_call.1} parent=11 // pred_region
          _
        $region16: #{tpu_custom_call.1} parent=11 // pred_fallthru
          _
        // Predicated region
        $region17: #{tpu_custom_call.1} parent=11 // pred_check
          %p176 = pneg %p104
        $region18: #{tpu_custom_call.1} parent=11 // pred_check_branch
          %178 = sbr.rel (%p176) target = $region20
        $region19: #{tpu_custom_call.1} parent=11 // pred_region
          %s180 = ssub.s32 128, 128
          %181 = vsyncadd [#allocation6], %s180
          %s182 = smul.addr %s27, 128
          %s183 = scalar_lea.hbm %s2, %s182
          %s185 = sshll.u32 [#allocation5], 4
          %s186 = int_to_ptr.vmem [resolvable:$true] %s185
          %188 = dma.hbm_to_vmem [thread:$0]  %s183, 128, %s186, [#allocation6]
        $region20: #{tpu_custom_call.1} parent=11 // pred_fallthru
          _
        // Predicated region
        $region21: #{tpu_custom_call.1} parent=11 // pred_check
          %p189 = pneg %p130
        $region22: #{tpu_custom_call.1} parent=11 // pred_check_branch
          %191 = sbr.rel (%p189) target = $region24
        $region23: #{tpu_custom_call.1} parent=11 // pred_region
          %p192 = scmp.lt.s32.totalorder %s27, 0
          %s193 = scalar_select %p192, %s27, 0
          %s194 = smul.addr %s193, 8
          %s195 = scalar_lea.vmem %s3, %s194
        $region24: #{tpu_custom_call.1} parent=11 // pred_fallthru
          _
      $region12: #{tpu_custom_call.1} parent=5 // pred_fallthru
        _
      %p196 = scmp.lt.s32.totalorder %s17, 2
      // Predicated region
      $region25: #{tpu_custom_call.1} parent=5 // pred_check
        %p197 = pneg %p196
      $region26: #{tpu_custom_call.1} parent=5 // pred_check_branch
        %199 = sbr.rel (%p197) target = $region28
      $region27: #{tpu_custom_call.1} parent=5 // pred_region
        // Predicated region
        $region29: #{tpu_custom_call.1} parent=27 // pred_check
          %p200 = pneg %p72
        $region30: #{tpu_custom_call.1} parent=27 // pred_check_branch
          %202 = sbr.rel (%p200) target = $region32
        $region31: #{tpu_custom_call.1} parent=27 // pred_region
          %s203 = sand.u32 %s62, 1
          %s204 = scalar_lea.sflag [#allocation3], %s203
          %s205 = sand.u32 %s62, 1
          %s206 = smul.addr %s205, 16
          %s207 = scalar_lea.vmem [#allocation2], %s206
          %s209 = ssub.s32 256, 256
          %210 = vsyncadd %s204, %s209
          %s211 = smul.addr %s25, 2
          %s212 = smul.addr %s24, 2
          %s213 = sadd.s32 %s211, %s212
          %s214 = smul.addr %s213, 128
          %s215 = scalar_lea.hbm %s1, %s214
          %s217 = sshll.u32 %s207, 4
          %s218 = int_to_ptr.vmem [resolvable:$true] %s217
          %220 = dma.hbm_to_vmem [thread:$0]  %s215, 256, %s218, %s204
        $region32: #{tpu_custom_call.1} parent=27 // pred_fallthru
          _
      $region28: #{tpu_custom_call.1} parent=5 // pred_fallthru
        _
      %p221 = scmp.le.s32.totalorder 1, %s17
      %p222 = scmp.lt.s32.totalorder %s17, 3
      %p223 = pnand %p221, %p222
      %p224 = pneg %p223
      // Predicated region
      $region33: #{tpu_custom_call.1} parent=5 // pred_check
        _
      $region34: #{tpu_custom_call.1} parent=5 // pred_check_branch
        %226 = sbr.rel (%p223) target = $region36
      $region35: #{tpu_custom_call.1} parent=5 // pred_region
        %s227 = ssub.s32 %s17, 1
        %s228 = sand.u32 %s65, 1
        %s229 = scalar_lea.sflag [#allocation3], %s228
        %s230 = sand.u32 %s65, 1
        %s231 = smul.addr %s230, 16
        %s232 = scalar_lea.vmem [#allocation2], %s231
        // Predicated region
        $region37: #{tpu_custom_call.1} parent=35 // pred_check
          %p233 = pneg %p78
        $region38: #{tpu_custom_call.1} parent=35 // pred_check_branch
          %235 = sbr.rel (%p233) target = $region40
        $region39: #{tpu_custom_call.1} parent=35 // pred_region
          %236 = dma.done %s229, 256
        $region40: #{tpu_custom_call.1} parent=35 // pred_fallthru
          _
        // Predicated region
        $region41: #{tpu_custom_call.1} parent=35 // pred_check
          %p237 = pneg %p104
        $region42: #{tpu_custom_call.1} parent=35 // pred_check_branch
          %239 = sbr.rel (%p237) target = $region44
        $region43: #{tpu_custom_call.1} parent=35 // pred_region
          %240 = dma.done [#allocation6], 128
        $region44: #{tpu_custom_call.1} parent=35 // pred_fallthru
          _
        %p241 = pneg %p50
        %p242 = pneg %p47
        %s243 = sand.u32 %s65, 1
        %s244 = scalar_lea.sflag [#allocation3], %s243
        %s245 = sand.u32 %s65, 1
        %s246 = smul.addr %s245, 16
        %s247 = scalar_lea.vmem [#allocation2], %s246
        %p248 = pneg %p78
        %p249 = pneg %p75
        %p250 = pneg %p104
        %p251 = pneg %p101
        %p252 = scmp.lt.s32.totalorder %s27, 0
        %s253 = scalar_select %p252, %s27, 0
        %s254 = smul.addr %s253, 8
        %s255 = scalar_lea.vmem %s3, %s254
        %p256 = pneg %p130
        %p257 = pneg %p127
        %p258 = pneg %p158
        %p259 = pneg %p155
        %s260 = sand.u32 %s145, 1
        %s261 = scalar_lea.sflag [#allocation4], %s260
        %s262 = sand.u32 %s145, 1
        %s263 = smul.addr %s262, 16
        %s264 = scalar_lea.vmem [#allocation7], %s263
        %p265 = scmp.lt.s32.totalorder %s27, 0
        %s266 = scalar_select %p265, %s27, 0
        %s267 = smul.addr %s266, 8
        %s268 = scalar_lea.vmem %s3, %s267
        %v269 = vld [vmem:[%s232] sm:$0xff]
        %v270 = vld [vmem:[%s232 + $0x8] sm:$0xff]
        %v271 = vld [vmem:[#allocation5] sm:$0xff]
        %v272 = vld [vmem:[%s268] sm:$0xff]
        %v273 = vld [vmem:[%s0] sm:$0xff]
        %274 = vrot.lane.b32.xlu0 %v269, 1
        %v275 = vpop.permute.xlu0 %274
        %276 = vrot.lane.b32.xlu0 %v270, 1
        %v277 = vpop.permute.xlu0 %276
        %v278 = vlaneseq
        %v279 = vand.u32 %v278, 127
        %vm280 = vcmp.lt.s32.totalorder %v279, 1
        %v281 = vsel %vm280, %v275, %v277
        %v282 = vsel %vm280, %v277, %v275
        %v284 = vlaneseq
        %v285 = vshrl.u32 %v284, 7
        %v286 = vsub.s32 0, %v285
        %v287 = vrot.slane %v273, %v286
        %v288 = vlaneseq
        %v289 = vshrl.u32 %v288, 7
        %v290 = vsub.s32 4, %v289
        %v291 = vrot.slane %v273, %v290
        %v294 = vlaneseq
        %v295 = vshrl.u32 %v294, 7
        %v296 = vsub.s32 0, %v295
        %v297 = vrot.slane %v287, %v296
        %v298 = vlaneseq
        %v299 = vshrl.u32 %v298, 7
        %v300 = vsub.s32 0, %v299
        %v301 = vrot.slane %v291, %v300
        %v302 = vmul.f32 %v282, %v297
        %v303 = vmul.f32 %v281, %v301
        %304 = vrot.lane.b32.xlu0 %v269, 127
        %v305 = vpop.permute.xlu0 %304
        %306 = vrot.lane.b32.xlu0 %v270, 127
        %v307 = vpop.permute.xlu0 %306
        %vm308 = vcmp.lt.s32.totalorder %v279, 127
        %v309 = vsel %vm308, %v305, %v307
        %v310 = vsel %vm308, %v307, %v305
        %v311 = vlaneseq
        %v312 = vshrl.u32 %v311, 7
        %v313 = vsub.s32 1, %v312
        %v314 = vrot.slane %v273, %v313
        %v315 = vlaneseq
        %v316 = vshrl.u32 %v315, 7
        %v317 = vsub.s32 5, %v316
        %v318 = vrot.slane %v273, %v317
        %v321 = vlaneseq
        %v322 = vshrl.u32 %v321, 7
        %v323 = vsub.s32 1, %v322
        %v324 = vrot.slane %v314, %v323
        %v325 = vlaneseq
        %v326 = vshrl.u32 %v325, 7
        %v327 = vsub.s32 1, %v326
        %v328 = vrot.slane %v318, %v327
        %v329 = vmul.f32 %v309, %v324
        %v330 = vmul.f32 %v310, %v328
        %332 = vset.pattern.permute.xlu0 0
        %333 = vperm.xlu0 %332, %v271
        %v334 = vpop.permute.xlu0 %333
        %v336 = vmul.f32 %v334, %v302
        %v337 = vmul.f32 %v334, %v303
        %338 = vset.pattern.permute.xlu0 1
        %339 = vperm.xlu0 %338, %v271
        %v340 = vpop.permute.xlu0 %339
        %v342 = vmul.f32 %v340, %v269
        %v343 = vmul.f32 %v340, %v270
        %v344 = vadd.f32 %v336, %v342
        %v345 = vadd.f32 %v337, %v343
        %346 = vset.pattern.permute.xlu0 2
        %347 = vperm.xlu0 %346, %v271
        %v348 = vpop.permute.xlu0 %347
        %v350 = vmul.f32 %v348, %v329
        %v351 = vmul.f32 %v348, %v330
        %v352 = vadd.f32 %v344, %v350
        %v353 = vadd.f32 %v345, %v351
        %354 = vset.pattern.permute.xlu0 3
        %355 = vperm.xlu0 %354, %v271
        %v356 = vpop.permute.xlu0 %355
        %v358 = vmul.f32 %v356, %v302
        %v359 = vmul.f32 %v356, %v303
        %360 = vset.pattern.permute.xlu0 4
        %361 = vperm.xlu0 %360, %v271
        %v362 = vpop.permute.xlu0 %361
        %v364 = vmul.f32 %v362, %v269
        %v365 = vmul.f32 %v362, %v270
        %v366 = vadd.f32 %v358, %v364
        %v367 = vadd.f32 %v359, %v365
        %368 = vset.pattern.permute.xlu0 5
        %369 = vperm.xlu0 %368, %v271
        %v370 = vpop.permute.xlu0 %369
        %v372 = vmul.f32 %v370, %v329
        %v373 = vmul.f32 %v370, %v330
        %v374 = vadd.f32 %v366, %v372
        %v375 = vadd.f32 %v367, %v373
        %376 = vset.pattern.permute.xlu0 6
        %377 = vperm.xlu0 %376, %v271
        %v378 = vpop.permute.xlu0 %377
        %v380 = vmul.f32 %v378, %v302
        %v381 = vmul.f32 %v378, %v303
        %382 = vset.pattern.permute.xlu0 7
        %383 = vperm.xlu0 %382, %v271
        %v384 = vpop.permute.xlu0 %383
        %v386 = vmul.f32 %v384, %v269
        %v387 = vmul.f32 %v384, %v270
        %v388 = vadd.f32 %v380, %v386
        %v389 = vadd.f32 %v381, %v387
        %390 = vset.pattern.permute.xlu0 8
        %391 = vperm.xlu0 %390, %v271
        %v392 = vpop.permute.xlu0 %391
        %v394 = vmul.f32 %v392, %v329
        %v395 = vmul.f32 %v392, %v330
        %v396 = vadd.f32 %v388, %v394
        %v397 = vadd.f32 %v389, %v395
        %399 = vset.pattern.permute.xlu0 0
        %400 = vperm.xlu0 %399, %v272
        %v401 = vpop.permute.xlu0 %400
        %v403 = vadd.f32 %v374, %v401
        %v404 = vadd.f32 %v375, %v401
        %405 = vrot.lane.b32.xlu0 %v352, 16
        %v406 = vpop.permute.xlu0 %405
        %407 = vrot.lane.b32.xlu0 %v353, 16
        %v408 = vpop.permute.xlu0 %407
        %vm409 = vcmp.lt.s32.totalorder %v279, 16
        %v410 = vsel %vm409, %v406, %v408
        %v411 = vsel %vm409, %v408, %v406
        %v412 = vlaneseq
        %v413 = vshrl.u32 %v412, 7
        %v414 = vsub.s32 2, %v413
        %v415 = vrot.slane %v273, %v414
        %v416 = vlaneseq
        %v417 = vshrl.u32 %v416, 7
        %v418 = vsub.s32 6, %v417
        %v419 = vrot.slane %v273, %v418
        %v422 = vlaneseq
        %v423 = vshrl.u32 %v422, 7
        %v424 = vsub.s32 2, %v423
        %v425 = vrot.slane %v415, %v424
        %v426 = vlaneseq
        %v427 = vshrl.u32 %v426, 7
        %v428 = vsub.s32 2, %v427
        %v429 = vrot.slane %v419, %v428
        %v430 = vmul.f32 %v411, %v425
        %v431 = vmul.f32 %v410, %v429
        %v432 = vadd.f32 %v403, %v430
        %v433 = vadd.f32 %v404, %v431
        %434 = vrot.lane.b32.xlu0 %v396, 112
        %v435 = vpop.permute.xlu0 %434
        %436 = vrot.lane.b32.xlu0 %v397, 112
        %v437 = vpop.permute.xlu0 %436
        %vm438 = vcmp.lt.s32.totalorder %v279, 112
        %v439 = vsel %vm438, %v435, %v437
        %v440 = vsel %vm438, %v437, %v435
        %v441 = vlaneseq
        %v442 = vshrl.u32 %v441, 7
        %v443 = vsub.s32 3, %v442
        %v444 = vrot.slane %v273, %v443
        %v445 = vlaneseq
        %v446 = vshrl.u32 %v445, 7
        %v447 = vsub.s32 7, %v446
        %v448 = vrot.slane %v273, %v447
        %v451 = vlaneseq
        %v452 = vshrl.u32 %v451, 7
        %v453 = vsub.s32 3, %v452
        %v454 = vrot.slane %v444, %v453
        %v455 = vlaneseq
        %v456 = vshrl.u32 %v455, 7
        %v457 = vsub.s32 3, %v456
        %v458 = vrot.slane %v448, %v457
        %v459 = vmul.f32 %v439, %v454
        %v460 = vmul.f32 %v440, %v458
        %v461 = vadd.f32 %v432, %v459
        %v462 = vadd.f32 %v433, %v460
        %463 = vst [vmem:[%s264] sm:$0xff] %v461
        %464 = vst [vmem:[%s264 + $0x8] sm:$0xff] %v462
        %s465 = sand.u32 %s145, 1
        %s466 = scalar_lea.sflag [#allocation4], %s465
        %s467 = sand.u32 %s145, 1
        %s468 = smul.addr %s467, 16
        %s469 = scalar_lea.vmem [#allocation7], %s468
        // Predicated region
        $region45: #{tpu_custom_call.1} parent=35 // pred_check
          %p470 = pneg %p155
        $region46: #{tpu_custom_call.1} parent=35 // pred_check_branch
          %472 = sbr.rel (%p470) target = $region48
        $region47: #{tpu_custom_call.1} parent=35 // pred_region
          %s474 = ssub.s32 256, 256
          %475 = vsyncadd %s466, %s474
          %s476 = smul.addr %s27, 2
          %s477 = smul.addr %s26, 2
          %s478 = sadd.s32 %s476, %s477
          %s479 = smul.addr %s478, 128
          %s480 = scalar_lea.hbm %s4, %s479
          %s482 = sshll.u32 %s469, 4
          %s483 = int_to_ptr.vmem [resolvable:$true] %s482
          %485 = dma.vmem_to_hbm [thread:$0]  %s483, 256, %s480, %s466
        $region48: #{tpu_custom_call.1} parent=35 // pred_fallthru
          _
      $region36: #{tpu_custom_call.1} parent=5 // pred_fallthru
        _
      %p486 = scmp.le.s32.totalorder 2, %s17
      // Predicated region
      $region49: #{tpu_custom_call.1} parent=5 // pred_check
        %p487 = pneg %p486
      $region50: #{tpu_custom_call.1} parent=5 // pred_check_branch
        %489 = sbr.rel (%p487) target = $region52
      $region51: #{tpu_custom_call.1} parent=5 // pred_region
        %s490 = ssub.s32 %s17, 2
        // Predicated region
        $region53: #{tpu_custom_call.1} parent=51 // pred_check
          %p491 = pneg %p161
        $region54: #{tpu_custom_call.1} parent=51 // pred_check_branch
          %493 = sbr.rel (%p491) target = $region56
        $region55: #{tpu_custom_call.1} parent=51 // pred_region
          %s494 = sand.u32 %s146, 1
          %s495 = scalar_lea.sflag [#allocation4], %s494
          %s496 = sand.u32 %s146, 1
          %s497 = smul.addr %s496, 16
          %s498 = scalar_lea.vmem [#allocation7], %s497
          %499 = dma.done %s495, 256
        $region56: #{tpu_custom_call.1} parent=51 // pred_fallthru
          _
      $region52: #{tpu_custom_call.1} parent=5 // pred_fallthru
        _
    $region6: #{tpu_custom_call.1} parent=1 // loop_footer
      %s21 = sadd.s32 1, %s17
    $region7: #{tpu_custom_call.1} parent=1 // loop_footer_branch
      %16 = sbr.rel target = $region3
    $region8: #{tpu_custom_call.1} parent=1 // loop_exit
      _
    %500 = vsyncpa [#allocation3], 1
    %s501 = scalar_lea.sflag [#allocation3], 1
    %502 = vsyncpa %s501, 1
    %503 = vsyncpa [#allocation6], 1
    %504 = vsyncpa [#allocation4], 1
    %s505 = scalar_lea.sflag [#allocation4], 1
    %506 = vsyncpa %s505, 1

</llo_original>
